<compile_context>
chip_gen: v5e
topology: v5e:2x2
jax: 0.10.0
libtpu: 0.0.40
codegen_flags: <defaults>
</compile_context>

<pallas_src>
import math

import jax
import jax.numpy as jnp
import numpy as np
from jax.experimental import pallas as pl
from jax.experimental.pallas import tpu as pltpu


# ---------------------------------------------------------------------------
# Static RMAC region geometry (faithful port of the torch reference index math).
# ---------------------------------------------------------------------------
def rmac_region_levels(H, W, L):
    ovr = 0.4
    steps = np.array([2, 3, 4, 5, 6, 7], dtype=np.float32)

    w = min(W, H)
    b = (max(H, W) - w) / (steps - 1)
    idx = int(np.argmin(np.abs(((w ** 2 - w * b) / (w ** 2)) - ovr)))

    Wd = idx + 1 if H < W else 0
    Hd = idx + 1 if H > W else 0

    levels = []
    for l in range(1, L + 1):
        wl = math.floor(2 * w / (l + 1))
        wl2 = math.floor(wl / 2 - 1)

        b = 0.0 if (l + Wd == 1) else (W - wl) / (l + Wd - 1)
        cenW = [int(math.floor(wl2 + k * np.float32(b)) - wl2)
                for k in range(l - 1 + Wd + 1)]
        b = 0.0 if (l + Hd == 1) else (H - wl) / (l + Hd - 1)
        cenH = [int(math.floor(wl2 + k * np.float32(b)) - wl2)
                for k in range(l - 1 + Hd + 1)]

        if wl == 0:
            continue
        levels.append((wl, cenH, cenW))
    return levels


def _num_regions(levels):
    # +1 for the global (full H x W) window.
    return 1 + sum(len(cenH) * len(cenW) for (_, cenH, cenW) in levels)


def build_region_masks(levels, H, W, n_regions):
    """(n_regions, H*W) int32 membership masks over the flattened spatial index.
    Row 0 is the global window (kept for index alignment; the kernel skips it)."""
    HW = H * W
    masks = np.zeros((n_regions, HW), dtype=np.int32)
    masks[0, :] = 1
    rr, cc = np.meshgrid(np.arange(H), np.arange(W), indexing="ij")
    rr = rr.reshape(-1)
    cc = cc.reshape(-1)
    r = 1
    for (wl, cenH, cenW) in levels:
        for i in cenH:
            rm = (rr >= i) & (rr < i + wl)
            for j in cenW:
                cm = (cc >= j) & (cc < j + wl)
                masks[r] = (rm & cm).astype(np.int32)
                r += 1
    assert r == n_regions
    return masks


# ---------------------------------------------------------------------------
# Padded-aware VMEM accounting and tile selection.
# ---------------------------------------------------------------------------
def _roundup(x, m):
    return (x + m - 1) // m * m


def _padded_block_bytes(n_t, c_t, HW, itemsize, use_f32_scratch):
    """VMEM bytes of one (n_t, c_t, HW) input block including (sublane, lane)
    tiling padding and the optional one-time f32 upcast scratch."""
    lanes = _roundup(HW, 128)
    pack = max(8, 32 // itemsize)           # 8 (f32) / 16 (bf16) / 32 (int8) sublanes
    b = n_t * _roundup(c_t, pack) * lanes * itemsize
    if use_f32_scratch:
        b += n_t * _roundup(c_t, 8) * lanes * 4
    return b


def _pick_c_tile(C, HW, itemsize, use_f32_scratch, budget):
    if _padded_block_bytes(1, C, HW, itemsize, use_f32_scratch) <= budget:
        return C
    fallback = None
    for d in range(C - 1, 0, -1):
        if C % d:
            continue
        fits = _padded_block_bytes(1, d, HW, itemsize, use_f32_scratch) <= budget
        if fits and d % 128 == 0:
            return d                           # lane-aligned output tile
        if fits and fallback is None:
            fallback = d
    if fallback is not None:
        # TODO(synk): non-128-aligned c_tile -> masked output stores; only hit for
        # channel counts with no 128-multiple divisor that fits the budget.
        return fallback
    return C                                   # nothing fits; padded vmem_limit still sized


def _pick_n_tile(N, c_tile, HW, itemsize, use_f32_scratch, budget):
    for d in range(N, 0, -1):
        if N % d == 0 and _padded_block_bytes(d, c_tile, HW, itemsize,
                                              use_f32_scratch) <= budget:
            return d
    return 1


# ---------------------------------------------------------------------------
# Kernel 1: per-region, per-channel spatial maxes.
#   grid = (N // n_tile, C // c_tile), both axes "parallel" (no cross-step state).
# ---------------------------------------------------------------------------
def make_region_max_kernel(n_regions, use_f32_scratch, in_dtype):
    compute_dtype = jnp.float32 if use_f32_scratch else in_dtype

    def kernel(m_ref, x_ref, o_ref, *scratch):
        # m_ref : (n_regions, HW) int32 region-membership masks
        # x_ref : (n_tile, c_tile, HW)  input tile, HW dense on the lane axis
        # o_ref : (n_tile, n_regions, c_tile) f32 per-region channel maxes
        if use_f32_scratch:
            xf = scratch[0]
            xf[...] = x_ref[...].astype(jnp.float32)   # one upfront convert (v5e bf16)
            src = xf
        else:
            src = x_ref
        neg = jnp.array(-jnp.inf, dtype=compute_dtype)

        # Region 0 = global HxW window: unmasked lane reduce.
        results = [jnp.max(src[...], axis=-1).astype(jnp.float32)]
        # Remaining regions: one fused masked select + lane reduce each.
        for r in range(1, n_regions):
            m = m_ref[r] != 0                                    # (HW,)
            v = jnp.max(jnp.where(m, src[...], neg), axis=-1)    # (n_tile, c_tile)
            results.append(v.astype(jnp.float32))

        # Single batched, lane-dense store (no per-region narrow sub-stores).
        o_ref[...] = jnp.stack(results, axis=1)

    return kernel


# ---------------------------------------------------------------------------
# Kernel 2 (epilogue): L2-normalize each region vector over C and sum regions.
# ---------------------------------------------------------------------------
def make_rmac_epilogue_kernel(eps):
    def kernel(v_ref, o_ref):
        V = v_ref[0]                                       # (n_regions, C) f32
        ssq = jnp.sum(V * V, axis=1, keepdims=True)        # (n_regions, 1)
        inv = pl.reciprocal(jnp.sqrt(ssq) + eps, approx=False)
        o_ref[0] = jnp.sum(V * inv, axis=0, keepdims=True).astype(o_ref.dtype)

    return kernel


# ---------------------------------------------------------------------------
# Wrapper
# ---------------------------------------------------------------------------
def rmac_pallas(x_nchw, L=3, eps=1e-6, c_tile=None, n_tile=None,
                max_block_bytes=4 * 1024 * 1024):
    """RMAC pooling: (N, C, H, W) -> (N, C, 1, 1), matching the PyTorch module.

    max_block_bytes: soft budget for one (n_tile, c_tile, H*W) input block
    (padded accounting).  The default keeps the double-buffered working set well
    under v7x's 64 MiB while amortizing per-grid-step overhead; it may be raised
    (e.g. 16-32 MiB) on v5e/v6e which have 128 MiB of VMEM.
    """
    N, C, H, W = x_nchw.shape
    HW = H * W
    dtype = jnp.dtype(x_nchw.dtype)
    itemsize = dtype.itemsize
    use_f32_scratch = dtype != np.dtype("float32")

    levels = rmac_region_levels(H, W, L)
    n_regions = _num_regions(levels)
    masks = jnp.asarray(build_region_masks(levels, H, W, n_regions))

    if c_tile is None:
        c_tile = _pick_c_tile(C, HW, itemsize, use_f32_scratch, max_block_bytes)
    assert C % c_tile == 0, "c_tile must divide C"
    if n_tile is None:
        n_tile = _pick_n_tile(N, c_tile, HW, itemsize, use_f32_scratch, max_block_bytes)
    assert N % n_tile == 0, "n_tile must divide N"

    # Padded VMEM accounting: 2x input (double buffer) + ~1x in-kernel temporaries
    # + f32 upcast scratch + 2x output + 2x mask table + margin.
    lanes_hw = _roundup(HW, 128)
    pack_in = max(8, 32 // itemsize)
    in_block = n_tile * _roundup(c_tile, pack_in) * lanes_hw * itemsize
    xf_block = n_tile * _roundup(c_tile, 8) * lanes_hw * 4 if use_f32_scratch else 0
    out_block = n_tile * _roundup(n_regions, 8) * _roundup(c_tile, 128) * 4
    mask_block = _roundup(n_regions, 8) * lanes_hw * 4
    need = 3 * in_block + xf_block + 2 * out_block + 2 * mask_block + (4 << 20)
    vmem_limit = int(min(128 << 20, max(16 << 20, need)))

    x_flat = x_nchw.reshape(N, C, HW)      # free for contiguous NCHW: H*W -> lane axis

    scratch_shapes = ([pltpu.VMEM((n_tile, c_tile, HW), jnp.float32)]
                      if use_f32_scratch else [])

    # Pass 1: per-region, per-channel maxes (no cross-tile state -> fully parallel).
    region_max = pl.pallas_call(
        make_region_max_kernel(n_regions, use_f32_scratch, x_nchw.dtype),
        out_shape=jax.ShapeDtypeStruct((N, n_regions, C), jnp.float32),
        grid=(N // n_tile, C // c_tile),
        in_specs=[
            pl.BlockSpec((n_regions, HW), lambda nb, ct: (0, 0)),
            pl.BlockSpec((n_tile, c_tile, HW), lambda nb, ct: (nb, ct, 0)),
        ],
        out_specs=pl.BlockSpec((n_tile, n_regions, c_tile),
                               lambda nb, ct: (nb, 0, ct)),
        scratch_shapes=scratch_shapes,
        compiler_params=pltpu.CompilerParams(
            dimension_semantics=("parallel", "parallel"),
            vmem_limit_bytes=vmem_limit),
    )(masks, x_flat)

    # Pass 2 (tiny): L2-normalize over C per region, sum regions.
    pooled = pl.pallas_call(
        make_rmac_epilogue_kernel(eps),
        out_shape=jax.ShapeDtypeStruct((N, 1, C), x_nchw.dtype),
        grid=(N,),
        in_specs=[pl.BlockSpec((1, n_regions, C), lambda n: (n, 0, 0))],
        out_specs=pl.BlockSpec((1, 1, C), lambda n: (n, 0, 0)),
        compiler_params=pltpu.CompilerParams(dimension_semantics=("parallel",)),
    )(region_max)

    # (N, 1, C) -> (N, C, 1, 1): identical element order, free reshape.
    return pooled.reshape(N, C, 1, 1)


# ---------------------------------------------------------------------------
# Pure numpy reference (correctness check only)
# ---------------------------------------------------------------------------
def rmac_ref(x_nchw, L=3, eps=1e-6):
    x = np.asarray(x_nchw, dtype=np.float32)
    _, _, H, W = x.shape
    levels = rmac_region_levels(H, W, L)

    def norm_pool(patch):
        v = patch.max(axis=(2, 3))                              # (N, C)
        n = np.sqrt((v * v).sum(axis=1, keepdims=True))
        return v / (n + eps)

    acc = norm_pool(x)
    for (wl, cenH, cenW) in levels:
        for i in cenH:
            for j in cenW:
                acc = acc + norm_pool(x[:, :, i:i + wl, j:j + wl])
    N, C = acc.shape
    return acc.reshape(N, C, 1, 1)


if __name__ == "__main__":
    key = jax.random.PRNGKey(0)
    k1, k2 = jax.random.split(key)

    # Small shape matching the module's expected NCHW conv feature map.
    N, C, H, W = 2, 4, 16, 16
    x = jax.random.normal(k1, (N, C, H, W), dtype=jnp.float32)
    out = jax.block_until_ready(rmac_pallas(x, L=3, eps=1e-6))
    ref = rmac_ref(np.asarray(x), L=3, eps=1e-6)
    assert out.shape == (N, C, 1, 1)
    assert np.allclose(np.asarray(out), ref, rtol=1e-5, atol=1e-5), (
        "Pallas RMAC mismatch vs reference (single-tile path)")

    # Multi channel-tile grid + non-square spatial map.
    N2, C2, H2, W2 = 2, 256, 20, 24
    x2 = jax.random.normal(k2, (N2, C2, H2, W2), dtype=jnp.float32)
    out2 = jax.block_until_ready(rmac_pallas(x2, L=3, eps=1e-6, c_tile=128))
    ref2 = rmac_ref(np.asarray(x2), L=3, eps=1e-6)
    assert out2.shape == (N2, C2, 1, 1)
    assert np.allclose(np.asarray(out2), ref2, rtol=1e-5, atol=1e-5), (
        "Pallas RMAC mismatch vs reference (multi-tile path)")

    # bf16 input exercises the one-time f32 upcast scratch (v5e-friendly path).
    xb = x.astype(jnp.bfloat16)
    outb = jax.block_until_ready(rmac_pallas(xb, L=3, eps=1e-6))
    refb = rmac_ref(np.asarray(xb.astype(jnp.float32)), L=3, eps=1e-6)
    assert outb.dtype == jnp.bfloat16
    assert np.allclose(np.asarray(outb.astype(jnp.float32)), refb,
                       rtol=2e-2, atol=2e-2), (
        "Pallas RMAC mismatch vs reference (bf16 path)")

    print("KERNEL_OK")
</pallas_src>

<mosaic_0001>
module attributes {stable_mosaic.version = 11 : i64} {
  func.func @kernel(%arg0: i32, %arg1: i32, %arg2: memref<15x256xi32, #tpu.memory_space<vmem>>, %arg3: memref<2x4x256xf32, #tpu.memory_space<vmem>>, %arg4: memref<2x15x4xf32, #tpu.memory_space<vmem>>) attributes {dimension_semantics = [#tpu.dimension_semantics<parallel>, #tpu.dimension_semantics<parallel>], iteration_bounds = array<i64: 1, 1>, scalar_prefetch = 0 : i64, scratch_operands = 0 : i64, tpu.core_type = #tpu.core_type<tc>, window_params = [{pipeline_mode = #tpu.pipeline_mode<synchronous>, transform_indices = @transform_0, window_bounds = array<i64: 15, 256>}, {transform_indices = @transform_1, window_bounds = array<i64: 2, 4, 256>}, {transform_indices = @transform_2, window_bounds = array<i64: 2, 15, 4>}]} {
    %c0 = arith.constant 0 : index
    %c0_0 = arith.constant 0 : index
    %c0_1 = arith.constant 0 : index
    %0 = vector.load %arg3[%c0, %c0_0, %c0_1] : memref<2x4x256xf32, #tpu.memory_space<vmem>>, vector<2x4x256xf32>
    %cst = arith.constant dense<0xFF800000> : vector<2x4xf32>
    %1 = vector.multi_reduction <maximumf>, %0, %cst [2] : vector<2x4x256xf32> to vector<2x4xf32>
    %c1 = arith.constant 1 : index
    %c0_2 = arith.constant 0 : index
    %2 = vector.load %arg2[%c1, %c0_2] : memref<15x256xi32, #tpu.memory_space<vmem>>, vector<1x256xi32>
    %3 = vector.shape_cast %2 : vector<1x256xi32> to vector<256xi32>
    %c0_i32 = arith.constant 0 : i32
    %4 = vector.broadcast %c0_i32 : i32 to vector<256xi32>
    %5 = arith.cmpi ne, %3, %4 : vector<256xi32>
    %c0_3 = arith.constant 0 : index
    %c0_4 = arith.constant 0 : index
    %c0_5 = arith.constant 0 : index
    %6 = vector.load %arg3[%c0_3, %c0_4, %c0_5] : memref<2x4x256xf32, #tpu.memory_space<vmem>>, vector<2x4x256xf32>
    %cst_6 = arith.constant 0xFF800000 : f32
    %7 = vector.shape_cast %5 : vector<256xi1> to vector<1x1x256xi1>
    %8 = vector.broadcast %7 : vector<1x1x256xi1> to vector<2x4x256xi1>
    %9 = vector.broadcast %cst_6 : f32 to vector<2x4x256xf32>
    %10 = arith.select %8, %6, %9 : vector<2x4x256xi1>, vector<2x4x256xf32>
    %cst_7 = arith.constant dense<0xFF800000> : vector<2x4xf32>
    %11 = vector.multi_reduction <maximumf>, %10, %cst_7 [2] : vector<2x4x256xf32> to vector<2x4xf32>
    %c2 = arith.constant 2 : index
    %c0_8 = arith.constant 0 : index
    %12 = vector.load %arg2[%c2, %c0_8] : memref<15x256xi32, #tpu.memory_space<vmem>>, vector<1x256xi32>
    %13 = vector.shape_cast %12 : vector<1x256xi32> to vector<256xi32>
    %c0_i32_9 = arith.constant 0 : i32
    %14 = vector.broadcast %c0_i32_9 : i32 to vector<256xi32>
    %15 = arith.cmpi ne, %13, %14 : vector<256xi32>
    %c0_10 = arith.constant 0 : index
    %c0_11 = arith.constant 0 : index
    %c0_12 = arith.constant 0 : index
    %16 = vector.load %arg3[%c0_10, %c0_11, %c0_12] : memref<2x4x256xf32, #tpu.memory_space<vmem>>, vector<2x4x256xf32>
    %cst_13 = arith.constant 0xFF800000 : f32
    %17 = vector.shape_cast %15 : vector<256xi1> to vector<1x1x256xi1>
    %18 = vector.broadcast %17 : vector<1x1x256xi1> to vector<2x4x256xi1>
    %19 = vector.broadcast %cst_13 : f32 to vector<2x4x256xf32>
    %20 = arith.select %18, %16, %19 : vector<2x4x256xi1>, vector<2x4x256xf32>
    %cst_14 = arith.constant dense<0xFF800000> : vector<2x4xf32>
    %21 = vector.multi_reduction <maximumf>, %20, %cst_14 [2] : vector<2x4x256xf32> to vector<2x4xf32>
    %c3 = arith.constant 3 : index
    %c0_15 = arith.constant 0 : index
    %22 = vector.load %arg2[%c3, %c0_15] : memref<15x256xi32, #tpu.memory_space<vmem>>, vector<1x256xi32>
    %23 = vector.shape_cast %22 : vector<1x256xi32> to vector<256xi32>
    %c0_i32_16 = arith.constant 0 : i32
    %24 = vector.broadcast %c0_i32_16 : i32 to vector<256xi32>
    %25 = arith.cmpi ne, %23, %24 : vector<256xi32>
    %c0_17 = arith.constant 0 : index
    %c0_18 = arith.constant 0 : index
    %c0_19 = arith.constant 0 : index
    %26 = vector.load %arg3[%c0_17, %c0_18, %c0_19] : memref<2x4x256xf32, #tpu.memory_space<vmem>>, vector<2x4x256xf32>
    %cst_20 = arith.constant 0xFF800000 : f32
    %27 = vector.shape_cast %25 : vector<256xi1> to vector<1x1x256xi1>
    %28 = vector.broadcast %27 : vector<1x1x256xi1> to vector<2x4x256xi1>
    %29 = vector.broadcast %cst_20 : f32 to vector<2x4x256xf32>
    %30 = arith.select %28, %26, %29 : vector<2x4x256xi1>, vector<2x4x256xf32>
    %cst_21 = arith.constant dense<0xFF800000> : vector<2x4xf32>
    %31 = vector.multi_reduction <maximumf>, %30, %cst_21 [2] : vector<2x4x256xf32> to vector<2x4xf32>
    %c4 = arith.constant 4 : index
    %c0_22 = arith.constant 0 : index
    %32 = vector.load %arg2[%c4, %c0_22] : memref<15x256xi32, #tpu.memory_space<vmem>>, vector<1x256xi32>
    %33 = vector.shape_cast %32 : vector<1x256xi32> to vector<256xi32>
    %c0_i32_23 = arith.constant 0 : i32
    %34 = vector.broadcast %c0_i32_23 : i32 to vector<256xi32>
    %35 = arith.cmpi ne, %33, %34 : vector<256xi32>
    %c0_24 = arith.constant 0 : index
    %c0_25 = arith.constant 0 : index
    %c0_26 = arith.constant 0 : index
    %36 = vector.load %arg3[%c0_24, %c0_25, %c0_26] : memref<2x4x256xf32, #tpu.memory_space<vmem>>, vector<2x4x256xf32>
    %cst_27 = arith.constant 0xFF800000 : f32
    %37 = vector.shape_cast %35 : vector<256xi1> to vector<1x1x256xi1>
    %38 = vector.broadcast %37 : vector<1x1x256xi1> to vector<2x4x256xi1>
    %39 = vector.broadcast %cst_27 : f32 to vector<2x4x256xf32>
    %40 = arith.select %38, %36, %39 : vector<2x4x256xi1>, vector<2x4x256xf32>
    %cst_28 = arith.constant dense<0xFF800000> : vector<2x4xf32>
    %41 = vector.multi_reduction <maximumf>, %40, %cst_28 [2] : vector<2x4x256xf32> to vector<2x4xf32>
    %c5 = arith.constant 5 : index
    %c0_29 = arith.constant 0 : index
    %42 = vector.load %arg2[%c5, %c0_29] : memref<15x256xi32, #tpu.memory_space<vmem>>, vector<1x256xi32>
    %43 = vector.shape_cast %42 : vector<1x256xi32> to vector<256xi32>
    %c0_i32_30 = arith.constant 0 : i32
    %44 = vector.broadcast %c0_i32_30 : i32 to vector<256xi32>
    %45 = arith.cmpi ne, %43, %44 : vector<256xi32>
    %c0_31 = arith.constant 0 : index
    %c0_32 = arith.constant 0 : index
    %c0_33 = arith.constant 0 : index
    %46 = vector.load %arg3[%c0_31, %c0_32, %c0_33] : memref<2x4x256xf32, #tpu.memory_space<vmem>>, vector<2x4x256xf32>
    %cst_34 = arith.constant 0xFF800000 : f32
    %47 = vector.shape_cast %45 : vector<256xi1> to vector<1x1x256xi1>
    %48 = vector.broadcast %47 : vector<1x1x256xi1> to vector<2x4x256xi1>
    %49 = vector.broadcast %cst_34 : f32 to vector<2x4x256xf32>
    %50 = arith.select %48, %46, %49 : vector<2x4x256xi1>, vector<2x4x256xf32>
    %cst_35 = arith.constant dense<0xFF800000> : vector<2x4xf32>
    %51 = vector.multi_reduction <maximumf>, %50, %cst_35 [2] : vector<2x4x256xf32> to vector<2x4xf32>
    %c6 = arith.constant 6 : index
    %c0_36 = arith.constant 0 : index
    %52 = vector.load %arg2[%c6, %c0_36] : memref<15x256xi32, #tpu.memory_space<vmem>>, vector<1x256xi32>
    %53 = vector.shape_cast %52 : vector<1x256xi32> to vector<256xi32>
    %c0_i32_37 = arith.constant 0 : i32
    %54 = vector.broadcast %c0_i32_37 : i32 to vector<256xi32>
    %55 = arith.cmpi ne, %53, %54 : vector<256xi32>
    %c0_38 = arith.constant 0 : index
    %c0_39 = arith.constant 0 : index
    %c0_40 = arith.constant 0 : index
    %56 = vector.load %arg3[%c0_38, %c0_39, %c0_40] : memref<2x4x256xf32, #tpu.memory_space<vmem>>, vector<2x4x256xf32>
    %cst_41 = arith.constant 0xFF800000 : f32
    %57 = vector.shape_cast %55 : vector<256xi1> to vector<1x1x256xi1>
    %58 = vector.broadcast %57 : vector<1x1x256xi1> to vector<2x4x256xi1>
    %59 = vector.broadcast %cst_41 : f32 to vector<2x4x256xf32>
    %60 = arith.select %58, %56, %59 : vector<2x4x256xi1>, vector<2x4x256xf32>
    %cst_42 = arith.constant dense<0xFF800000> : vector<2x4xf32>
    %61 = vector.multi_reduction <maximumf>, %60, %cst_42 [2] : vector<2x4x256xf32> to vector<2x4xf32>
    %c7 = arith.constant 7 : index
    %c0_43 = arith.constant 0 : index
    %62 = vector.load %arg2[%c7, %c0_43] : memref<15x256xi32, #tpu.memory_space<vmem>>, vector<1x256xi32>
    %63 = vector.shape_cast %62 : vector<1x256xi32> to vector<256xi32>
    %c0_i32_44 = arith.constant 0 : i32
    %64 = vector.broadcast %c0_i32_44 : i32 to vector<256xi32>
    %65 = arith.cmpi ne, %63, %64 : vector<256xi32>
    %c0_45 = arith.constant 0 : index
    %c0_46 = arith.constant 0 : index
    %c0_47 = arith.constant 0 : index
    %66 = vector.load %arg3[%c0_45, %c0_46, %c0_47] : memref<2x4x256xf32, #tpu.memory_space<vmem>>, vector<2x4x256xf32>
    %cst_48 = arith.constant 0xFF800000 : f32
    %67 = vector.shape_cast %65 : vector<256xi1> to vector<1x1x256xi1>
    %68 = vector.broadcast %67 : vector<1x1x256xi1> to vector<2x4x256xi1>
    %69 = vector.broadcast %cst_48 : f32 to vector<2x4x256xf32>
    %70 = arith.select %68, %66, %69 : vector<2x4x256xi1>, vector<2x4x256xf32>
    %cst_49 = arith.constant dense<0xFF800000> : vector<2x4xf32>
    %71 = vector.multi_reduction <maximumf>, %70, %cst_49 [2] : vector<2x4x256xf32> to vector<2x4xf32>
    %c8 = arith.constant 8 : index
    %c0_50 = arith.constant 0 : index
    %72 = vector.load %arg2[%c8, %c0_50] : memref<15x256xi32, #tpu.memory_space<vmem>>, vector<1x256xi32>
    %73 = vector.shape_cast %72 : vector<1x256xi32> to vector<256xi32>
    %c0_i32_51 = arith.constant 0 : i32
    %74 = vector.broadcast %c0_i32_51 : i32 to vector<256xi32>
    %75 = arith.cmpi ne, %73, %74 : vector<256xi32>
    %c0_52 = arith.constant 0 : index
    %c0_53 = arith.constant 0 : index
    %c0_54 = arith.constant 0 : index
    %76 = vector.load %arg3[%c0_52, %c0_53, %c0_54] : memref<2x4x256xf32, #tpu.memory_space<vmem>>, vector<2x4x256xf32>
    %cst_55 = arith.constant 0xFF800000 : f32
    %77 = vector.shape_cast %75 : vector<256xi1> to vector<1x1x256xi1>
    %78 = vector.broadcast %77 : vector<1x1x256xi1> to vector<2x4x256xi1>
    %79 = vector.broadcast %cst_55 : f32 to vector<2x4x256xf32>
    %80 = arith.select %78, %76, %79 : vector<2x4x256xi1>, vector<2x4x256xf32>
    %cst_56 = arith.constant dense<0xFF800000> : vector<2x4xf32>
    %81 = vector.multi_reduction <maximumf>, %80, %cst_56 [2] : vector<2x4x256xf32> to vector<2x4xf32>
    %c9 = arith.constant 9 : index
    %c0_57 = arith.constant 0 : index
    %82 = vector.load %arg2[%c9, %c0_57] : memref<15x256xi32, #tpu.memory_space<vmem>>, vector<1x256xi32>
    %83 = vector.shape_cast %82 : vector<1x256xi32> to vector<256xi32>
    %c0_i32_58 = arith.constant 0 : i32
    %84 = vector.broadcast %c0_i32_58 : i32 to vector<256xi32>
    %85 = arith.cmpi ne, %83, %84 : vector<256xi32>
    %c0_59 = arith.constant 0 : index
    %c0_60 = arith.constant 0 : index
    %c0_61 = arith.constant 0 : index
    %86 = vector.load %arg3[%c0_59, %c0_60, %c0_61] : memref<2x4x256xf32, #tpu.memory_space<vmem>>, vector<2x4x256xf32>
    %cst_62 = arith.constant 0xFF800000 : f32
    %87 = vector.shape_cast %85 : vector<256xi1> to vector<1x1x256xi1>
    %88 = vector.broadcast %87 : vector<1x1x256xi1> to vector<2x4x256xi1>
    %89 = vector.broadcast %cst_62 : f32 to vector<2x4x256xf32>
    %90 = arith.select %88, %86, %89 : vector<2x4x256xi1>, vector<2x4x256xf32>
    %cst_63 = arith.constant dense<0xFF800000> : vector<2x4xf32>
    %91 = vector.multi_reduction <maximumf>, %90, %cst_63 [2] : vector<2x4x256xf32> to vector<2x4xf32>
    %c10 = arith.constant 10 : index
    %c0_64 = arith.constant 0 : index
    %92 = vector.load %arg2[%c10, %c0_64] : memref<15x256xi32, #tpu.memory_space<vmem>>, vector<1x256xi32>
    %93 = vector.shape_cast %92 : vector<1x256xi32> to vector<256xi32>
    %c0_i32_65 = arith.constant 0 : i32
    %94 = vector.broadcast %c0_i32_65 : i32 to vector<256xi32>
    %95 = arith.cmpi ne, %93, %94 : vector<256xi32>
    %c0_66 = arith.constant 0 : index
    %c0_67 = arith.constant 0 : index
    %c0_68 = arith.constant 0 : index
    %96 = vector.load %arg3[%c0_66, %c0_67, %c0_68] : memref<2x4x256xf32, #tpu.memory_space<vmem>>, vector<2x4x256xf32>
    %cst_69 = arith.constant 0xFF800000 : f32
    %97 = vector.shape_cast %95 : vector<256xi1> to vector<1x1x256xi1>
    %98 = vector.broadcast %97 : vector<1x1x256xi1> to vector<2x4x256xi1>
    %99 = vector.broadcast %cst_69 : f32 to vector<2x4x256xf32>
    %100 = arith.select %98, %96, %99 : vector<2x4x256xi1>, vector<2x4x256xf32>
    %cst_70 = arith.constant dense<0xFF800000> : vector<2x4xf32>
    %101 = vector.multi_reduction <maximumf>, %100, %cst_70 [2] : vector<2x4x256xf32> to vector<2x4xf32>
    %c11 = arith.constant 11 : index
    %c0_71 = arith.constant 0 : index
    %102 = vector.load %arg2[%c11, %c0_71] : memref<15x256xi32, #tpu.memory_space<vmem>>, vector<1x256xi32>
    %103 = vector.shape_cast %102 : vector<1x256xi32> to vector<256xi32>
    %c0_i32_72 = arith.constant 0 : i32
    %104 = vector.broadcast %c0_i32_72 : i32 to vector<256xi32>
    %105 = arith.cmpi ne, %103, %104 : vector<256xi32>
    %c0_73 = arith.constant 0 : index
    %c0_74 = arith.constant 0 : index
    %c0_75 = arith.constant 0 : index
    %106 = vector.load %arg3[%c0_73, %c0_74, %c0_75] : memref<2x4x256xf32, #tpu.memory_space<vmem>>, vector<2x4x256xf32>
    %cst_76 = arith.constant 0xFF800000 : f32
    %107 = vector.shape_cast %105 : vector<256xi1> to vector<1x1x256xi1>
    %108 = vector.broadcast %107 : vector<1x1x256xi1> to vector<2x4x256xi1>
    %109 = vector.broadcast %cst_76 : f32 to vector<2x4x256xf32>
    %110 = arith.select %108, %106, %109 : vector<2x4x256xi1>, vector<2x4x256xf32>
    %cst_77 = arith.constant dense<0xFF800000> : vector<2x4xf32>
    %111 = vector.multi_reduction <maximumf>, %110, %cst_77 [2] : vector<2x4x256xf32> to vector<2x4xf32>
    %c12 = arith.constant 12 : index
    %c0_78 = arith.constant 0 : index
    %112 = vector.load %arg2[%c12, %c0_78] : memref<15x256xi32, #tpu.memory_space<vmem>>, vector<1x256xi32>
    %113 = vector.shape_cast %112 : vector<1x256xi32> to vector<256xi32>
    %c0_i32_79 = arith.constant 0 : i32
    %114 = vector.broadcast %c0_i32_79 : i32 to vector<256xi32>
    %115 = arith.cmpi ne, %113, %114 : vector<256xi32>
    %c0_80 = arith.constant 0 : index
    %c0_81 = arith.constant 0 : index
    %c0_82 = arith.constant 0 : index
    %116 = vector.load %arg3[%c0_80, %c0_81, %c0_82] : memref<2x4x256xf32, #tpu.memory_space<vmem>>, vector<2x4x256xf32>
    %cst_83 = arith.constant 0xFF800000 : f32
    %117 = vector.shape_cast %115 : vector<256xi1> to vector<1x1x256xi1>
    %118 = vector.broadcast %117 : vector<1x1x256xi1> to vector<2x4x256xi1>
    %119 = vector.broadcast %cst_83 : f32 to vector<2x4x256xf32>
    %120 = arith.select %118, %116, %119 : vector<2x4x256xi1>, vector<2x4x256xf32>
    %cst_84 = arith.constant dense<0xFF800000> : vector<2x4xf32>
    %121 = vector.multi_reduction <maximumf>, %120, %cst_84 [2] : vector<2x4x256xf32> to vector<2x4xf32>
    %c13 = arith.constant 13 : index
    %c0_85 = arith.constant 0 : index
    %122 = vector.load %arg2[%c13, %c0_85] : memref<15x256xi32, #tpu.memory_space<vmem>>, vector<1x256xi32>
    %123 = vector.shape_cast %122 : vector<1x256xi32> to vector<256xi32>
    %c0_i32_86 = arith.constant 0 : i32
    %124 = vector.broadcast %c0_i32_86 : i32 to vector<256xi32>
    %125 = arith.cmpi ne, %123, %124 : vector<256xi32>
    %c0_87 = arith.constant 0 : index
    %c0_88 = arith.constant 0 : index
    %c0_89 = arith.constant 0 : index
    %126 = vector.load %arg3[%c0_87, %c0_88, %c0_89] : memref<2x4x256xf32, #tpu.memory_space<vmem>>, vector<2x4x256xf32>
    %cst_90 = arith.constant 0xFF800000 : f32
    %127 = vector.shape_cast %125 : vector<256xi1> to vector<1x1x256xi1>
    %128 = vector.broadcast %127 : vector<1x1x256xi1> to vector<2x4x256xi1>
    %129 = vector.broadcast %cst_90 : f32 to vector<2x4x256xf32>
    %130 = arith.select %128, %126, %129 : vector<2x4x256xi1>, vector<2x4x256xf32>
    %cst_91 = arith.constant dense<0xFF800000> : vector<2x4xf32>
    %131 = vector.multi_reduction <maximumf>, %130, %cst_91 [2] : vector<2x4x256xf32> to vector<2x4xf32>
    %c14 = arith.constant 14 : index
    %c0_92 = arith.constant 0 : index
    %132 = vector.load %arg2[%c14, %c0_92] : memref<15x256xi32, #tpu.memory_space<vmem>>, vector<1x256xi32>
    %133 = vector.shape_cast %132 : vector<1x256xi32> to vector<256xi32>
    %c0_i32_93 = arith.constant 0 : i32
    %134 = vector.broadcast %c0_i32_93 : i32 to vector<256xi32>
    %135 = arith.cmpi ne, %133, %134 : vector<256xi32>
    %c0_94 = arith.constant 0 : index
    %c0_95 = arith.constant 0 : index
    %c0_96 = arith.constant 0 : index
    %136 = vector.load %arg3[%c0_94, %c0_95, %c0_96] : memref<2x4x256xf32, #tpu.memory_space<vmem>>, vector<2x4x256xf32>
    %cst_97 = arith.constant 0xFF800000 : f32
    %137 = vector.shape_cast %135 : vector<256xi1> to vector<1x1x256xi1>
    %138 = vector.broadcast %137 : vector<1x1x256xi1> to vector<2x4x256xi1>
    %139 = vector.broadcast %cst_97 : f32 to vector<2x4x256xf32>
    %140 = arith.select %138, %136, %139 : vector<2x4x256xi1>, vector<2x4x256xf32>
    %cst_98 = arith.constant dense<0xFF800000> : vector<2x4xf32>
    %141 = vector.multi_reduction <maximumf>, %140, %cst_98 [2] : vector<2x4x256xf32> to vector<2x4xf32>
    %142 = vector.shape_cast %1 : vector<2x4xf32> to vector<2x1x4xf32>
    %143 = vector.shape_cast %11 : vector<2x4xf32> to vector<2x1x4xf32>
    %144 = vector.shape_cast %21 : vector<2x4xf32> to vector<2x1x4xf32>
    %145 = vector.shape_cast %31 : vector<2x4xf32> to vector<2x1x4xf32>
    %146 = vector.shape_cast %41 : vector<2x4xf32> to vector<2x1x4xf32>
    %147 = vector.shape_cast %51 : vector<2x4xf32> to vector<2x1x4xf32>
    %148 = vector.shape_cast %61 : vector<2x4xf32> to vector<2x1x4xf32>
    %149 = vector.shape_cast %71 : vector<2x4xf32> to vector<2x1x4xf32>
    %150 = vector.shape_cast %81 : vector<2x4xf32> to vector<2x1x4xf32>
    %151 = vector.shape_cast %91 : vector<2x4xf32> to vector<2x1x4xf32>
    %152 = vector.shape_cast %101 : vector<2x4xf32> to vector<2x1x4xf32>
    %153 = vector.shape_cast %111 : vector<2x4xf32> to vector<2x1x4xf32>
    %154 = vector.shape_cast %121 : vector<2x4xf32> to vector<2x1x4xf32>
    %155 = vector.shape_cast %131 : vector<2x4xf32> to vector<2x1x4xf32>
    %156 = vector.shape_cast %141 : vector<2x4xf32> to vector<2x1x4xf32>
    %157 = tpu.concatenate %142, %143, %144, %145, %146, %147, %148, %149, %150, %151, %152, %153, %154, %155, %156 in 1 : vector<2x1x4xf32>, vector<2x1x4xf32>, vector<2x1x4xf32>, vector<2x1x4xf32>, vector<2x1x4xf32>, vector<2x1x4xf32>, vector<2x1x4xf32>, vector<2x1x4xf32>, vector<2x1x4xf32>, vector<2x1x4xf32>, vector<2x1x4xf32>, vector<2x1x4xf32>, vector<2x1x4xf32>, vector<2x1x4xf32>, vector<2x1x4xf32> -> vector<2x15x4xf32>
    %c0_99 = arith.constant 0 : index
    %c0_100 = arith.constant 0 : index
    %c0_101 = arith.constant 0 : index
    %158 = vector.load %arg4[%c0_99, %c0_100, %c0_101] : memref<2x15x4xf32, #tpu.memory_space<vmem>>, vector<2x15x4xf32>
    tpu.vector_store %arg4[%c0_99, %c0_100, %c0_101], %157 {strides = array<i32>} : memref<2x15x4xf32, #tpu.memory_space<vmem>>, vector<2x15x4xf32>,
    return
  }
  func.func @transform_0(%arg0: i32, %arg1: i32) -> (i32, i32) {
    %c0_i32 = arith.constant 0 : i32
    %c0_i32_0 = arith.constant 0 : i32
    %c0_i32_1 = arith.constant 0 : i32
    return %c0_i32, %c0_i32_0 : i32, i32
  }
  func.func @transform_1(%arg0: i32, %arg1: i32) -> (i32, i32, i32) {
    %c0_i32 = arith.constant 0 : i32
    %c0_i32_0 = arith.constant 0 : i32
    return %arg0, %arg1, %c0_i32 : i32, i32, i32
  }
  func.func @transform_2(%arg0: i32, %arg1: i32) -> (i32, i32, i32) {
    %c0_i32 = arith.constant 0 : i32
    %c0_i32_0 = arith.constant 0 : i32
    return %arg0, %c0_i32, %arg1 : i32, i32, i32
  }
}

</mosaic_0001>

<llo_original>
// kernel: tpu_custom_call.1
$region0: #{tpu_custom_call.1}
  #allocation0 [shape = 'u32[]', space=smem, size = 0x4, offset = 0x4, fixed_abs, tag = 'smem constant byte address 0x4 - core index']
  #allocation1 [shape = 'u32[72,128]{1,0:T(1,128)}', space=vmem, size = 0x9000, scoped, tag = 'internal scratch']
  %s0 = inlined_call_operand.hbm [shape: s32[15,256], index: 0, kind: input, shape index: {}]
  %s1 = inlined_call_operand.hbm [shape: f32[2,4,256], index: 1, kind: input, shape index: {}]
  %s2 = inlined_call_operand.vmem [shape: f32[2,15,4], index: 2, kind: output, shape index: {}]
  %s3 = sld [smem:[#allocation0]]
  $region26: #{tpu_custom_call.1} parent=0
    _
  %s5 = ssub.s32 1, %s3
  %s6 = scalar_select 0, %s5, %s3
  $region1: #{tpu_custom_call.1} parent=0
    #allocation2 [shape = 'u8[16384]{0}', space=vmem, size = 0x4000, scoped, tag = 'input window, operand 0, single buffered']
    #allocation3 [shape = 's32[1]{0}', space=sflag, size = 0x4, scoped, tag = 'scoped memory for tpu_custom_call.1']
    #allocation4 [shape = 'u8[8192]{0}', space=vmem, size = 0x2000, scoped, tag = 'input window, operand 1, single buffered']
    #allocation5 [shape = 's32[1]{0}', space=sflag, size = 0x4, scoped, tag = 'scoped memory for tpu_custom_call.1']
    %7 = vsyncpa [#allocation3], 0
    %8 = vsyncpa [#allocation5], 0
    // Predicated region
    $region2: #{tpu_custom_call.1} parent=1 // pred_check
      _
    $region3: #{tpu_custom_call.1} parent=1 // pred_check_branch
      %10 = sbr.rel (0) target = $region5
    $region4: #{tpu_custom_call.1} parent=1 // pred_region
      %12 = vsyncadd [#allocation3], 0
      %s13 = sshll.u32 %s0, 4
      %s14 = int_to_ptr.hbm [resolvable:$true] %s13
      %s15 = sshll.u32 [#allocation2], 4
      %s16 = int_to_ptr.vmem [resolvable:$true] %s15
      %21 = dma.hbm_to_vmem [thread:$0]  %s14, 512, %s16, [#allocation3], 256, 256, 16
    $region5: #{tpu_custom_call.1} parent=1 // pred_fallthru
      _
    // Predicated region
    $region6: #{tpu_custom_call.1} parent=1 // pred_check
      _
    $region7: #{tpu_custom_call.1} parent=1 // pred_check_branch
      %23 = sbr.rel (0) target = $region9
    $region8: #{tpu_custom_call.1} parent=1 // pred_region
      %25 = vsyncadd [#allocation5], 0
      %s26 = sshll.u32 %s1, 4
      %s27 = int_to_ptr.hbm [resolvable:$true] %s26
      %s28 = sshll.u32 [#allocation4], 4
      %s29 = int_to_ptr.vmem [resolvable:$true] %s28
      %34 = dma.hbm_to_vmem [thread:$0]  %s27, 256, %s29, [#allocation5], 128, 128, 8
    $region9: #{tpu_custom_call.1} parent=1 // pred_fallthru
      _
    // Predicated region
    $region10: #{tpu_custom_call.1} parent=1 // pred_check
      _
    $region11: #{tpu_custom_call.1} parent=1 // pred_check_branch
      %36 = sbr.rel (0) target = $region13
    $region12: #{tpu_custom_call.1} parent=1 // pred_region
      %38 = dma.done [#allocation3], 512
    $region13: #{tpu_custom_call.1} parent=1 // pred_fallthru
      _
    // Predicated region
    $region14: #{tpu_custom_call.1} parent=1 // pred_check
      _
    $region15: #{tpu_custom_call.1} parent=1 // pred_check_branch
      %40 = sbr.rel (0) target = $region17
    $region16: #{tpu_custom_call.1} parent=1 // pred_region
      %42 = dma.done [#allocation5], 256
    $region17: #{tpu_custom_call.1} parent=1 // pred_fallthru
      _
    %v43 = vld [vmem:[#allocation4] sm:$0xff]
    %v44 = vld [vmem:[#allocation4 + $0x8] sm:$0xff]
    %47 = vst [vmem:[#allocation1] ss:$2 sm:$0xff] %v43
    %v48 = vld.sshfl [vmem:[#allocation1] sm:$0xff pattern:$0x75316420]
    %v49 = vld.sshfl [vmem:[#allocation1 + $0x8] sm:$0xff pattern:$0x75316420]
    %s50 = scalar_lea.vmem [#allocation1], 16
    %51 = vst [vmem:[%s50] ss:$2 sm:$0xff] %v44
    %v52 = vld.sshfl [vmem:[#allocation1 + $0x10] sm:$0xff pattern:$0x75316420]
    %v53 = vld.sshfl [vmem:[#allocation1 + $0x18] sm:$0xff pattern:$0x75316420]
    %vm58 = vcmask 1043456
    %v59 = vsel %vm58, %v48, -inf
    %v60 = vsel %vm58, %v49, -inf
    %v61 = vmax.f32 %v59, %v60
    %62 = vmax.xlane.f32.xlu0 %v61
    %v63 = vpop.xlane.xlu0 %62
    %v64 = vsel %vm58, %v52, -inf
    %v65 = vsel %vm58, %v53, -inf
    %v66 = vmax.f32 %v64, %v65
    %67 = vmax.xlane.f32.xlu0 %v66
    %v68 = vpop.xlane.xlu0 %67
    %s69 = scalar_lea.vmem [#allocation2], 1
    %v70 = vld [vmem:[%s69] ss:$8 sm:$0x3]
    %vm71 = vcmp.ne.s32.totalorder %v70, 0
    %v72 = vsel %vm71, 1, 0
    %vm73 = vcmp.eq.s32.totalorder %v72, 1
    %v74 = vrot.slane %v43, 3
    %v75 = vrot.slane %v44, 3
    %vm76 = vcmask 1040384
    %v77 = vsel %vm76, %v43, %v74
    %vm78 = vcmask 1041409
    %v79 = vsel %vm78, %v43, %v74
    %v80 = vrot.slane %v79, 1
    %vm81 = vcmask 1042434
    %v82 = vsel %vm81, %v43, %v74
    %v83 = vrot.slane %v82, 2
    %vm84 = vcmask 1043459
    %v85 = vsel %vm84, %v43, %v74
    %v86 = vrot.slane %v85, 3
    %v87 = vsel %vm76, %v44, %v75
    %v88 = vsel %vm78, %v44, %v75
    %v89 = vrot.slane %v88, 1
    %v90 = vsel %vm81, %v44, %v75
    %v91 = vrot.slane %v90, 2
    %v92 = vsel %vm84, %v44, %v75
    %v93 = vrot.slane %v92, 3
    %v102 = vsel %vm73, %v77, -inf
    %v103 = vsel %vm73, %v80, -inf
    %v104 = vsel %vm73, %v83, -inf
    %v105 = vsel %vm73, %v86, -inf
    %v106 = vsel %vm73, %v87, -inf
    %v107 = vsel %vm73, %v89, -inf
    %v108 = vsel %vm73, %v91, -inf
    %v109 = vsel %vm73, %v93, -inf
    %118 = vst [vmem:[#allocation1] ss:$9 sm:$0xff] %v102
    %s119 = scalar_lea.vmem [#allocation1], 1
    %120 = vst [vmem:[%s119] ss:$9 sm:$0xff] %v103
    %s121 = scalar_lea.vmem [#allocation1], 2
    %122 = vst [vmem:[%s121] ss:$9 sm:$0xff] %v104
    %s123 = scalar_lea.vmem [#allocation1], 3
    %124 = vst [vmem:[%s123] ss:$9 sm:$0xff] %v105
    %v125 = vld [vmem:[#allocation1] sm:$0xff]
    %v126 = vld [vmem:[#allocation1 + $0x9] sm:$0xff]
    %127 = vst [vmem:[#allocation1] ss:$9 sm:$0xff] %v106
    %128 = vst [vmem:[%s119] ss:$9 sm:$0xff] %v107
    %129 = vst [vmem:[%s121] ss:$9 sm:$0xff] %v108
    %130 = vst [vmem:[%s123] ss:$9 sm:$0xff] %v109
    %v131 = vld [vmem:[#allocation1] sm:$0xff]
    %v132 = vld [vmem:[#allocation1 + $0x9] sm:$0xff]
    %v137 = vsel %vm58, %v125, -inf
    %v138 = vsel %vm58, %v126, -inf
    %v139 = vmax.f32 %v137, %v138
    %140 = vmax.xlane.f32.xlu0 %v139
    %v141 = vpop.xlane.xlu0 %140
    %v142 = vsel %vm58, %v131, -inf
    %v143 = vsel %vm58, %v132, -inf
    %v144 = vmax.f32 %v142, %v143
    %145 = vmax.xlane.f32.xlu0 %v144
    %v146 = vpop.xlane.xlu0 %145
    %s147 = scalar_lea.vmem [#allocation2], 2
    %v148 = vld [vmem:[%s147] ss:$8 sm:$0x3]
    %vm149 = vcmp.ne.s32.totalorder %v148, 0
    %v150 = vsel %vm149, 1, 0
    %vm151 = vcmp.eq.s32.totalorder %v150, 1
    %v152 = vsel %vm151, %v77, -inf
    %v153 = vsel %vm151, %v80, -inf
    %v154 = vsel %vm151, %v83, -inf
    %v155 = vsel %vm151, %v86, -inf
    %v156 = vsel %vm151, %v87, -inf
    %v157 = vsel %vm151, %v89, -inf
    %v158 = vsel %vm151, %v91, -inf
    %v159 = vsel %vm151, %v93, -inf
    %168 = vst [vmem:[#allocation1] ss:$9 sm:$0xff] %v152
    %s169 = scalar_lea.vmem [#allocation1], 1
    %170 = vst [vmem:[%s169] ss:$9 sm:$0xff] %v153
    %s171 = scalar_lea.vmem [#allocation1], 2
    %172 = vst [vmem:[%s171] ss:$9 sm:$0xff] %v154
    %s173 = scalar_lea.vmem [#allocation1], 3
    %174 = vst [vmem:[%s173] ss:$9 sm:$0xff] %v155
    %v175 = vld [vmem:[#allocation1] sm:$0xff]
    %v176 = vld [vmem:[#allocation1 + $0x9] sm:$0xff]
    %177 = vst [vmem:[#allocation1] ss:$9 sm:$0xff] %v156
    %178 = vst [vmem:[%s169] ss:$9 sm:$0xff] %v157
    %179 = vst [vmem:[%s171] ss:$9 sm:$0xff] %v158
    %180 = vst [vmem:[%s173] ss:$9 sm:$0xff] %v159
    %v181 = vld [vmem:[#allocation1] sm:$0xff]
    %v182 = vld [vmem:[#allocation1 + $0x9] sm:$0xff]
    %v187 = vsel %vm58, %v175, -inf
    %v188 = vsel %vm58, %v176, -inf
    %v189 = vmax.f32 %v187, %v188
    %190 = vmax.xlane.f32.xlu0 %v189
    %v191 = vpop.xlane.xlu0 %190
    %v192 = vsel %vm58, %v181, -inf
    %v193 = vsel %vm58, %v182, -inf
    %v194 = vmax.f32 %v192, %v193
    %195 = vmax.xlane.f32.xlu0 %v194
    %v196 = vpop.xlane.xlu0 %195
    %s197 = scalar_lea.vmem [#allocation2], 3
    %v198 = vld [vmem:[%s197] ss:$8 sm:$0x3]
    %vm199 = vcmp.ne.s32.totalorder %v198, 0
    %v200 = vsel %vm199, 1, 0
    %vm201 = vcmp.eq.s32.totalorder %v200, 1
    %v202 = vsel %vm201, %v77, -inf
    %v203 = vsel %vm201, %v80, -inf
    %v204 = vsel %vm201, %v83, -inf
    %v205 = vsel %vm201, %v86, -inf
    %v206 = vsel %vm201, %v87, -inf
    %v207 = vsel %vm201, %v89, -inf
    %v208 = vsel %vm201, %v91, -inf
    %v209 = vsel %vm201, %v93, -inf
    %218 = vst [vmem:[#allocation1] ss:$9 sm:$0xff] %v202
    %s219 = scalar_lea.vmem [#allocation1], 1
    %220 = vst [vmem:[%s219] ss:$9 sm:$0xff] %v203
    %s221 = scalar_lea.vmem [#allocation1], 2
    %222 = vst [vmem:[%s221] ss:$9 sm:$0xff] %v204
    %s223 = scalar_lea.vmem [#allocation1], 3
    %224 = vst [vmem:[%s223] ss:$9 sm:$0xff] %v205
    %v225 = vld [vmem:[#allocation1] sm:$0xff]
    %v226 = vld [vmem:[#allocation1 + $0x9] sm:$0xff]
    %227 = vst [vmem:[#allocation1] ss:$9 sm:$0xff] %v206
    %228 = vst [vmem:[%s219] ss:$9 sm:$0xff] %v207
    %229 = vst [vmem:[%s221] ss:$9 sm:$0xff] %v208
    %230 = vst [vmem:[%s223] ss:$9 sm:$0xff] %v209
    %v231 = vld [vmem:[#allocation1] sm:$0xff]
    %v232 = vld [vmem:[#allocation1 + $0x9] sm:$0xff]
    %v237 = vsel %vm58, %v225, -inf
    %v238 = vsel %vm58, %v226, -inf
    %v239 = vmax.f32 %v237, %v238
    %240 = vmax.xlane.f32.xlu0 %v239
    %v241 = vpop.xlane.xlu0 %240
    %v242 = vsel %vm58, %v231, -inf
    %v243 = vsel %vm58, %v232, -inf
    %v244 = vmax.f32 %v242, %v243
    %245 = vmax.xlane.f32.xlu0 %v244
    %v246 = vpop.xlane.xlu0 %245
    %s247 = scalar_lea.vmem [#allocation2], 4
    %v248 = vld [vmem:[%s247] ss:$8 sm:$0x3]
    %vm249 = vcmp.ne.s32.totalorder %v248, 0
    %v250 = vsel %vm249, 1, 0
    %vm251 = vcmp.eq.s32.totalorder %v250, 1
    %v252 = vsel %vm251, %v77, -inf
    %v253 = vsel %vm251, %v80, -inf
    %v254 = vsel %vm251, %v83, -inf
    %v255 = vsel %vm251, %v86, -inf
    %v256 = vsel %vm251, %v87, -inf
    %v257 = vsel %vm251, %v89, -inf
    %v258 = vsel %vm251, %v91, -inf
    %v259 = vsel %vm251, %v93, -inf
    %268 = vst [vmem:[#allocation1] ss:$9 sm:$0xff] %v252
    %s269 = scalar_lea.vmem [#allocation1], 1
    %270 = vst [vmem:[%s269] ss:$9 sm:$0xff] %v253
    %s271 = scalar_lea.vmem [#allocation1], 2
    %272 = vst [vmem:[%s271] ss:$9 sm:$0xff] %v254
    %s273 = scalar_lea.vmem [#allocation1], 3
    %274 = vst [vmem:[%s273] ss:$9 sm:$0xff] %v255
    %v275 = vld [vmem:[#allocation1] sm:$0xff]
    %v276 = vld [vmem:[#allocation1 + $0x9] sm:$0xff]
    %277 = vst [vmem:[#allocation1] ss:$9 sm:$0xff] %v256
    %278 = vst [vmem:[%s269] ss:$9 sm:$0xff] %v257
    %279 = vst [vmem:[%s271] ss:$9 sm:$0xff] %v258
    %280 = vst [vmem:[%s273] ss:$9 sm:$0xff] %v259
    %v281 = vld [vmem:[#allocation1] sm:$0xff]
    %v282 = vld [vmem:[#allocation1 + $0x9] sm:$0xff]
    %v287 = vsel %vm58, %v275, -inf
    %v288 = vsel %vm58, %v276, -inf
    %v289 = vmax.f32 %v287, %v288
    %290 = vmax.xlane.f32.xlu0 %v289
    %v291 = vpop.xlane.xlu0 %290
    %v292 = vsel %vm58, %v281, -inf
    %v293 = vsel %vm58, %v282, -inf
    %v294 = vmax.f32 %v292, %v293
    %295 = vmax.xlane.f32.xlu0 %v294
    %v296 = vpop.xlane.xlu0 %295
    %s297 = scalar_lea.vmem [#allocation2], 5
    %v298 = vld [vmem:[%s297] ss:$8 sm:$0x3]
    %vm299 = vcmp.ne.s32.totalorder %v298, 0
    %v300 = vsel %vm299, 1, 0
    %vm301 = vcmp.eq.s32.totalorder %v300, 1
    %v302 = vsel %vm301, %v77, -inf
    %v303 = vsel %vm301, %v80, -inf
    %v304 = vsel %vm301, %v83, -inf
    %v305 = vsel %vm301, %v86, -inf
    %v306 = vsel %vm301, %v87, -inf
    %v307 = vsel %vm301, %v89, -inf
    %v308 = vsel %vm301, %v91, -inf
    %v309 = vsel %vm301, %v93, -inf
    %318 = vst [vmem:[#allocation1] ss:$9 sm:$0xff] %v302
    %s319 = scalar_lea.vmem [#allocation1], 1
    %320 = vst [vmem:[%s319] ss:$9 sm:$0xff] %v303
    %s321 = scalar_lea.vmem [#allocation1], 2
    %322 = vst [vmem:[%s321] ss:$9 sm:$0xff] %v304
    %s323 = scalar_lea.vmem [#allocation1], 3
    %324 = vst [vmem:[%s323] ss:$9 sm:$0xff] %v305
    %v325 = vld [vmem:[#allocation1] sm:$0xff]
    %v326 = vld [vmem:[#allocation1 + $0x9] sm:$0xff]
    %327 = vst [vmem:[#allocation1] ss:$9 sm:$0xff] %v306
    %328 = vst [vmem:[%s319] ss:$9 sm:$0xff] %v307
    %329 = vst [vmem:[%s321] ss:$9 sm:$0xff] %v308
    %330 = vst [vmem:[%s323] ss:$9 sm:$0xff] %v309
    %v331 = vld [vmem:[#allocation1] sm:$0xff]
    %v332 = vld [vmem:[#allocation1 + $0x9] sm:$0xff]
    %v337 = vsel %vm58, %v325, -inf
    %v338 = vsel %vm58, %v326, -inf
    %v339 = vmax.f32 %v337, %v338
    %340 = vmax.xlane.f32.xlu0 %v339
    %v341 = vpop.xlane.xlu0 %340
    %v342 = vsel %vm58, %v331, -inf
    %v343 = vsel %vm58, %v332, -inf
    %v344 = vmax.f32 %v342, %v343
    %345 = vmax.xlane.f32.xlu0 %v344
    %v346 = vpop.xlane.xlu0 %345
    %s347 = scalar_lea.vmem [#allocation2], 6
    %v348 = vld [vmem:[%s347] ss:$8 sm:$0x3]
    %vm349 = vcmp.ne.s32.totalorder %v348, 0
    %v350 = vsel %vm349, 1, 0
    %vm351 = vcmp.eq.s32.totalorder %v350, 1
    %v352 = vsel %vm351, %v77, -inf
    %v353 = vsel %vm351, %v80, -inf
    %v354 = vsel %vm351, %v83, -inf
    %v355 = vsel %vm351, %v86, -inf
    %v356 = vsel %vm351, %v87, -inf
    %v357 = vsel %vm351, %v89, -inf
    %v358 = vsel %vm351, %v91, -inf
    %v359 = vsel %vm351, %v93, -inf
    %368 = vst [vmem:[#allocation1] ss:$9 sm:$0xff] %v352
    %s369 = scalar_lea.vmem [#allocation1], 1
    %370 = vst [vmem:[%s369] ss:$9 sm:$0xff] %v353
    %s371 = scalar_lea.vmem [#allocation1], 2
    %372 = vst [vmem:[%s371] ss:$9 sm:$0xff] %v354
    %s373 = scalar_lea.vmem [#allocation1], 3
    %374 = vst [vmem:[%s373] ss:$9 sm:$0xff] %v355
    %v375 = vld [vmem:[#allocation1] sm:$0xff]
    %v376 = vld [vmem:[#allocation1 + $0x9] sm:$0xff]
    %377 = vst [vmem:[#allocation1] ss:$9 sm:$0xff] %v356
    %378 = vst [vmem:[%s369] ss:$9 sm:$0xff] %v357
    %379 = vst [vmem:[%s371] ss:$9 sm:$0xff] %v358
    %380 = vst [vmem:[%s373] ss:$9 sm:$0xff] %v359
    %v381 = vld [vmem:[#allocation1] sm:$0xff]
    %v382 = vld [vmem:[#allocation1 + $0x9] sm:$0xff]
    %v387 = vsel %vm58, %v375, -inf
    %v388 = vsel %vm58, %v376, -inf
    %v389 = vmax.f32 %v387, %v388
    %390 = vmax.xlane.f32.xlu0 %v389
    %v391 = vpop.xlane.xlu0 %390
    %v392 = vsel %vm58, %v381, -inf
    %v393 = vsel %vm58, %v382, -inf
    %v394 = vmax.f32 %v392, %v393
    %395 = vmax.xlane.f32.xlu0 %v394
    %v396 = vpop.xlane.xlu0 %395
    %s397 = scalar_lea.vmem [#allocation2], 7
    %v398 = vld [vmem:[%s397] ss:$8 sm:$0x3]
    %vm399 = vcmp.ne.s32.totalorder %v398, 0
    %v400 = vsel %vm399, 1, 0
    %vm401 = vcmp.eq.s32.totalorder %v400, 1
    %v402 = vsel %vm401, %v77, -inf
    %v403 = vsel %vm401, %v80, -inf
    %v404 = vsel %vm401, %v83, -inf
    %v405 = vsel %vm401, %v86, -inf
    %v406 = vsel %vm401, %v87, -inf
    %v407 = vsel %vm401, %v89, -inf
    %v408 = vsel %vm401, %v91, -inf
    %v409 = vsel %vm401, %v93, -inf
    %418 = vst [vmem:[#allocation1] ss:$9 sm:$0xff] %v402
    %s419 = scalar_lea.vmem [#allocation1], 1
    %420 = vst [vmem:[%s419] ss:$9 sm:$0xff] %v403
    %s421 = scalar_lea.vmem [#allocation1], 2
    %422 = vst [vmem:[%s421] ss:$9 sm:$0xff] %v404
    %s423 = scalar_lea.vmem [#allocation1], 3
    %424 = vst [vmem:[%s423] ss:$9 sm:$0xff] %v405
    %v425 = vld [vmem:[#allocation1] sm:$0xff]
    %v426 = vld [vmem:[#allocation1 + $0x9] sm:$0xff]
    %427 = vst [vmem:[#allocation1] ss:$9 sm:$0xff] %v406
    %428 = vst [vmem:[%s419] ss:$9 sm:$0xff] %v407
    %429 = vst [vmem:[%s421] ss:$9 sm:$0xff] %v408
    %430 = vst [vmem:[%s423] ss:$9 sm:$0xff] %v409
    %v431 = vld [vmem:[#allocation1] sm:$0xff]
    %v432 = vld [vmem:[#allocation1 + $0x9] sm:$0xff]
    %v437 = vsel %vm58, %v425, -inf
    %v438 = vsel %vm58, %v426, -inf
    %v439 = vmax.f32 %v437, %v438
    %440 = vmax.xlane.f32.xlu0 %v439
    %v441 = vpop.xlane.xlu0 %440
    %v442 = vsel %vm58, %v431, -inf
    %v443 = vsel %vm58, %v432, -inf
    %v444 = vmax.f32 %v442, %v443
    %445 = vmax.xlane.f32.xlu0 %v444
    %v446 = vpop.xlane.xlu0 %445
    %s447 = scalar_lea.vmem [#allocation2], 16
    %v448 = vld [vmem:[%s447] ss:$8 sm:$0x3]
    %vm449 = vcmp.ne.s32.totalorder %v448, 0
    %v450 = vsel %vm449, 1, 0
    %vm451 = vcmp.eq.s32.totalorder %v450, 1
    %v452 = vsel %vm451, %v77, -inf
    %v453 = vsel %vm451, %v80, -inf
    %v454 = vsel %vm451, %v83, -inf
    %v455 = vsel %vm451, %v86, -inf
    %v456 = vsel %vm451, %v87, -inf
    %v457 = vsel %vm451, %v89, -inf
    %v458 = vsel %vm451, %v91, -inf
    %v459 = vsel %vm451, %v93, -inf
    %468 = vst [vmem:[#allocation1] ss:$9 sm:$0xff] %v452
    %s469 = scalar_lea.vmem [#allocation1], 1
    %470 = vst [vmem:[%s469] ss:$9 sm:$0xff] %v453
    %s471 = scalar_lea.vmem [#allocation1], 2
    %472 = vst [vmem:[%s471] ss:$9 sm:$0xff] %v454
    %s473 = scalar_lea.vmem [#allocation1], 3
    %474 = vst [vmem:[%s473] ss:$9 sm:$0xff] %v455
    %v475 = vld [vmem:[#allocation1] sm:$0xff]
    %v476 = vld [vmem:[#allocation1 + $0x9] sm:$0xff]
    %477 = vst [vmem:[#allocation1] ss:$9 sm:$0xff] %v456
    %478 = vst [vmem:[%s469] ss:$9 sm:$0xff] %v457
    %479 = vst [vmem:[%s471] ss:$9 sm:$0xff] %v458
    %480 = vst [vmem:[%s473] ss:$9 sm:$0xff] %v459
    %v481 = vld [vmem:[#allocation1] sm:$0xff]
    %v482 = vld [vmem:[#allocation1 + $0x9] sm:$0xff]
    %v487 = vsel %vm58, %v475, -inf
    %v488 = vsel %vm58, %v476, -inf
    %v489 = vmax.f32 %v487, %v488
    %490 = vmax.xlane.f32.xlu0 %v489
    %v491 = vpop.xlane.xlu0 %490
    %v492 = vsel %vm58, %v481, -inf
    %v493 = vsel %vm58, %v482, -inf
    %v494 = vmax.f32 %v492, %v493
    %495 = vmax.xlane.f32.xlu0 %v494
    %v496 = vpop.xlane.xlu0 %495
    %s497 = scalar_lea.vmem [#allocation2], 17
    %v498 = vld [vmem:[%s497] ss:$8 sm:$0x3]
    %vm499 = vcmp.ne.s32.totalorder %v498, 0
    %v500 = vsel %vm499, 1, 0
    %vm501 = vcmp.eq.s32.totalorder %v500, 1
    %v502 = vsel %vm501, %v77, -inf
    %v503 = vsel %vm501, %v80, -inf
    %v504 = vsel %vm501, %v83, -inf
    %v505 = vsel %vm501, %v86, -inf
    %v506 = vsel %vm501, %v87, -inf
    %v507 = vsel %vm501, %v89, -inf
    %v508 = vsel %vm501, %v91, -inf
    %v509 = vsel %vm501, %v93, -inf
    %518 = vst [vmem:[#allocation1] ss:$9 sm:$0xff] %v502
    %s519 = scalar_lea.vmem [#allocation1], 1
    %520 = vst [vmem:[%s519] ss:$9 sm:$0xff] %v503
    %s521 = scalar_lea.vmem [#allocation1], 2
    %522 = vst [vmem:[%s521] ss:$9 sm:$0xff] %v504
    %s523 = scalar_lea.vmem [#allocation1], 3
    %524 = vst [vmem:[%s523] ss:$9 sm:$0xff] %v505
    %v525 = vld [vmem:[#allocation1] sm:$0xff]
    %v526 = vld [vmem:[#allocation1 + $0x9] sm:$0xff]
    %527 = vst [vmem:[#allocation1] ss:$9 sm:$0xff] %v506
    %528 = vst [vmem:[%s519] ss:$9 sm:$0xff] %v507
    %529 = vst [vmem:[%s521] ss:$9 sm:$0xff] %v508
    %530 = vst [vmem:[%s523] ss:$9 sm:$0xff] %v509
    %v531 = vld [vmem:[#allocation1] sm:$0xff]
    %v532 = vld [vmem:[#allocation1 + $0x9] sm:$0xff]
    %v537 = vsel %vm58, %v525, -inf
    %v538 = vsel %vm58, %v526, -inf
    %v539 = vmax.f32 %v537, %v538
    %540 = vmax.xlane.f32.xlu0 %v539
    %v541 = vpop.xlane.xlu0 %540
    %v542 = vsel %vm58, %v531, -inf
    %v543 = vsel %vm58, %v532, -inf
    %v544 = vmax.f32 %v542, %v543
    %545 = vmax.xlane.f32.xlu0 %v544
    %v546 = vpop.xlane.xlu0 %545
    %s547 = scalar_lea.vmem [#allocation2], 18
    %v548 = vld [vmem:[%s547] ss:$8 sm:$0x3]
    %vm549 = vcmp.ne.s32.totalorder %v548, 0
    %v550 = vsel %vm549, 1, 0
    %vm551 = vcmp.eq.s32.totalorder %v550, 1
    %v552 = vsel %vm551, %v77, -inf
    %v553 = vsel %vm551, %v80, -inf
    %v554 = vsel %vm551, %v83, -inf
    %v555 = vsel %vm551, %v86, -inf
    %v556 = vsel %vm551, %v87, -inf
    %v557 = vsel %vm551, %v89, -inf
    %v558 = vsel %vm551, %v91, -inf
    %v559 = vsel %vm551, %v93, -inf
    %568 = vst [vmem:[#allocation1] ss:$9 sm:$0xff] %v552
    %s569 = scalar_lea.vmem [#allocation1], 1
    %570 = vst [vmem:[%s569] ss:$9 sm:$0xff] %v553
    %s571 = scalar_lea.vmem [#allocation1], 2
    %572 = vst [vmem:[%s571] ss:$9 sm:$0xff] %v554
    %s573 = scalar_lea.vmem [#allocation1], 3
    %574 = vst [vmem:[%s573] ss:$9 sm:$0xff] %v555
    %v575 = vld [vmem:[#allocation1] sm:$0xff]
    %v576 = vld [vmem:[#allocation1 + $0x9] sm:$0xff]
    %577 = vst [vmem:[#allocation1] ss:$9 sm:$0xff] %v556
    %578 = vst [vmem:[%s569] ss:$9 sm:$0xff] %v557
    %579 = vst [vmem:[%s571] ss:$9 sm:$0xff] %v558
    %580 = vst [vmem:[%s573] ss:$9 sm:$0xff] %v559
    %v581 = vld [vmem:[#allocation1] sm:$0xff]
    %v582 = vld [vmem:[#allocation1 + $0x9] sm:$0xff]
    %v587 = vsel %vm58, %v575, -inf
    %v588 = vsel %vm58, %v576, -inf
    %v589 = vmax.f32 %v587, %v588
    %590 = vmax.xlane.f32.xlu0 %v589
    %v591 = vpop.xlane.xlu0 %590
    %v592 = vsel %vm58, %v581, -inf
    %v593 = vsel %vm58, %v582, -inf
    %v594 = vmax.f32 %v592, %v593
    %595 = vmax.xlane.f32.xlu0 %v594
    %v596 = vpop.xlane.xlu0 %595
    %s597 = scalar_lea.vmem [#allocation2], 19
    %v598 = vld [vmem:[%s597] ss:$8 sm:$0x3]
    %vm599 = vcmp.ne.s32.totalorder %v598, 0
    %v600 = vsel %vm599, 1, 0
    %vm601 = vcmp.eq.s32.totalorder %v600, 1
    %v602 = vsel %vm601, %v77, -inf
    %v603 = vsel %vm601, %v80, -inf
    %v604 = vsel %vm601, %v83, -inf
    %v605 = vsel %vm601, %v86, -inf
    %v606 = vsel %vm601, %v87, -inf
    %v607 = vsel %vm601, %v89, -inf
    %v608 = vsel %vm601, %v91, -inf
    %v609 = vsel %vm601, %v93, -inf
    %618 = vst [vmem:[#allocation1] ss:$9 sm:$0xff] %v602
    %s619 = scalar_lea.vmem [#allocation1], 1
    %620 = vst [vmem:[%s619] ss:$9 sm:$0xff] %v603
    %s621 = scalar_lea.vmem [#allocation1], 2
    %622 = vst [vmem:[%s621] ss:$9 sm:$0xff] %v604
    %s623 = scalar_lea.vmem [#allocation1], 3
    %624 = vst [vmem:[%s623] ss:$9 sm:$0xff] %v605
    %v625 = vld [vmem:[#allocation1] sm:$0xff]
    %v626 = vld [vmem:[#allocation1 + $0x9] sm:$0xff]
    %627 = vst [vmem:[#allocation1] ss:$9 sm:$0xff] %v606
    %628 = vst [vmem:[%s619] ss:$9 sm:$0xff] %v607
    %629 = vst [vmem:[%s621] ss:$9 sm:$0xff] %v608
    %630 = vst [vmem:[%s623] ss:$9 sm:$0xff] %v609
    %v631 = vld [vmem:[#allocation1] sm:$0xff]
    %v632 = vld [vmem:[#allocation1 + $0x9] sm:$0xff]
    %v637 = vsel %vm58, %v625, -inf
    %v638 = vsel %vm58, %v626, -inf
    %v639 = vmax.f32 %v637, %v638
    %640 = vmax.xlane.f32.xlu0 %v639
    %v641 = vpop.xlane.xlu0 %640
    %v642 = vsel %vm58, %v631, -inf
    %v643 = vsel %vm58, %v632, -inf
    %v644 = vmax.f32 %v642, %v643
    %645 = vmax.xlane.f32.xlu0 %v644
    %v646 = vpop.xlane.xlu0 %645
    %s647 = scalar_lea.vmem [#allocation2], 20
    %v648 = vld [vmem:[%s647] ss:$8 sm:$0x3]
    %vm649 = vcmp.ne.s32.totalorder %v648, 0
    %v650 = vsel %vm649, 1, 0
    %vm651 = vcmp.eq.s32.totalorder %v650, 1
    %v652 = vsel %vm651, %v77, -inf
    %v653 = vsel %vm651, %v80, -inf
    %v654 = vsel %vm651, %v83, -inf
    %v655 = vsel %vm651, %v86, -inf
    %v656 = vsel %vm651, %v87, -inf
    %v657 = vsel %vm651, %v89, -inf
    %v658 = vsel %vm651, %v91, -inf
    %v659 = vsel %vm651, %v93, -inf
    %668 = vst [vmem:[#allocation1] ss:$9 sm:$0xff] %v652
    %s669 = scalar_lea.vmem [#allocation1], 1
    %670 = vst [vmem:[%s669] ss:$9 sm:$0xff] %v653
    %s671 = scalar_lea.vmem [#allocation1], 2
    %672 = vst [vmem:[%s671] ss:$9 sm:$0xff] %v654
    %s673 = scalar_lea.vmem [#allocation1], 3
    %674 = vst [vmem:[%s673] ss:$9 sm:$0xff] %v655
    %v675 = vld [vmem:[#allocation1] sm:$0xff]
    %v676 = vld [vmem:[#allocation1 + $0x9] sm:$0xff]
    %677 = vst [vmem:[#allocation1] ss:$9 sm:$0xff] %v656
    %678 = vst [vmem:[%s669] ss:$9 sm:$0xff] %v657
    %679 = vst [vmem:[%s671] ss:$9 sm:$0xff] %v658
    %680 = vst [vmem:[%s673] ss:$9 sm:$0xff] %v659
    %v681 = vld [vmem:[#allocation1] sm:$0xff]
    %v682 = vld [vmem:[#allocation1 + $0x9] sm:$0xff]
    %v687 = vsel %vm58, %v675, -inf
    %v688 = vsel %vm58, %v676, -inf
    %v689 = vmax.f32 %v687, %v688
    %690 = vmax.xlane.f32.xlu0 %v689
    %v691 = vpop.xlane.xlu0 %690
    %v692 = vsel %vm58, %v681, -inf
    %v693 = vsel %vm58, %v682, -inf
    %v694 = vmax.f32 %v692, %v693
    %695 = vmax.xlane.f32.xlu0 %v694
    %v696 = vpop.xlane.xlu0 %695
    %s697 = scalar_lea.vmem [#allocation2], 21
    %v698 = vld [vmem:[%s697] ss:$8 sm:$0x3]
    %vm699 = vcmp.ne.s32.totalorder %v698, 0
    %v700 = vsel %vm699, 1, 0
    %vm701 = vcmp.eq.s32.totalorder %v700, 1
    %v702 = vsel %vm701, %v77, -inf
    %v703 = vsel %vm701, %v80, -inf
    %v704 = vsel %vm701, %v83, -inf
    %v705 = vsel %vm701, %v86, -inf
    %v706 = vsel %vm701, %v87, -inf
    %v707 = vsel %vm701, %v89, -inf
    %v708 = vsel %vm701, %v91, -inf
    %v709 = vsel %vm701, %v93, -inf
    %718 = vst [vmem:[#allocation1] ss:$9 sm:$0xff] %v702
    %s719 = scalar_lea.vmem [#allocation1], 1
    %720 = vst [vmem:[%s719] ss:$9 sm:$0xff] %v703
    %s721 = scalar_lea.vmem [#allocation1], 2
    %722 = vst [vmem:[%s721] ss:$9 sm:$0xff] %v704
    %s723 = scalar_lea.vmem [#allocation1], 3
    %724 = vst [vmem:[%s723] ss:$9 sm:$0xff] %v705
    %v725 = vld [vmem:[#allocation1] sm:$0xff]
    %v726 = vld [vmem:[#allocation1 + $0x9] sm:$0xff]
    %727 = vst [vmem:[#allocation1] ss:$9 sm:$0xff] %v706
    %728 = vst [vmem:[%s719] ss:$9 sm:$0xff] %v707
    %729 = vst [vmem:[%s721] ss:$9 sm:$0xff] %v708
    %730 = vst [vmem:[%s723] ss:$9 sm:$0xff] %v709
    %v731 = vld [vmem:[#allocation1] sm:$0xff]
    %v732 = vld [vmem:[#allocation1 + $0x9] sm:$0xff]
    %v737 = vsel %vm58, %v725, -inf
    %v738 = vsel %vm58, %v726, -inf
    %v739 = vmax.f32 %v737, %v738
    %740 = vmax.xlane.f32.xlu0 %v739
    %v741 = vpop.xlane.xlu0 %740
    %v742 = vsel %vm58, %v731, -inf
    %v743 = vsel %vm58, %v732, -inf
    %v744 = vmax.f32 %v742, %v743
    %745 = vmax.xlane.f32.xlu0 %v744
    %v746 = vpop.xlane.xlu0 %745
    %s747 = scalar_lea.vmem [#allocation2], 22
    %v748 = vld [vmem:[%s747] ss:$8 sm:$0x3]
    %vm749 = vcmp.ne.s32.totalorder %v748, 0
    %v750 = vsel %vm749, 1, 0
    %vm751 = vcmp.eq.s32.totalorder %v750, 1
    %v752 = vsel %vm751, %v77, -inf
    %v753 = vsel %vm751, %v80, -inf
    %v754 = vsel %vm751, %v83, -inf
    %v755 = vsel %vm751, %v86, -inf
    %v756 = vsel %vm751, %v87, -inf
    %v757 = vsel %vm751, %v89, -inf
    %v758 = vsel %vm751, %v91, -inf
    %v759 = vsel %vm751, %v93, -inf
    %768 = vst [vmem:[#allocation1] ss:$9 sm:$0xff] %v752
    %s769 = scalar_lea.vmem [#allocation1], 1
    %770 = vst [vmem:[%s769] ss:$9 sm:$0xff] %v753
    %s771 = scalar_lea.vmem [#allocation1], 2
    %772 = vst [vmem:[%s771] ss:$9 sm:$0xff] %v754
    %s773 = scalar_lea.vmem [#allocation1], 3
    %774 = vst [vmem:[%s773] ss:$9 sm:$0xff] %v755
    %v775 = vld [vmem:[#allocation1] sm:$0xff]
    %v776 = vld [vmem:[#allocation1 + $0x9] sm:$0xff]
    %777 = vst [vmem:[#allocation1] ss:$9 sm:$0xff] %v756
    %778 = vst [vmem:[%s769] ss:$9 sm:$0xff] %v757
    %779 = vst [vmem:[%s771] ss:$9 sm:$0xff] %v758
    %780 = vst [vmem:[%s773] ss:$9 sm:$0xff] %v759
    %v781 = vld [vmem:[#allocation1] sm:$0xff]
    %v782 = vld [vmem:[#allocation1 + $0x9] sm:$0xff]
    %v787 = vsel %vm58, %v775, -inf
    %v788 = vsel %vm58, %v776, -inf
    %v789 = vmax.f32 %v787, %v788
    %790 = vmax.xlane.f32.xlu0 %v789
    %v791 = vpop.xlane.xlu0 %790
    %v792 = vsel %vm58, %v781, -inf
    %v793 = vsel %vm58, %v782, -inf
    %v794 = vmax.f32 %v792, %v793
    %795 = vmax.xlane.f32.xlu0 %v794
    %v796 = vpop.xlane.xlu0 %795
    %v799 = vlaneseq
    %v800 = vand.u32 %v799, 127
    %v801 = vperm.slane %v63, %v800
    %v802 = vperm.slane %v68, %v800
    %v807 = vperm.slane %v141, %v800
    %v808 = vperm.slane %v146, %v800
    %v813 = vperm.slane %v191, %v800
    %v814 = vperm.slane %v196, %v800
    %v819 = vperm.slane %v241, %v800
    %v820 = vperm.slane %v246, %v800
    %v825 = vperm.slane %v291, %v800
    %v826 = vperm.slane %v296, %v800
    %v831 = vperm.slane %v341, %v800
    %v832 = vperm.slane %v346, %v800
    %v837 = vperm.slane %v391, %v800
    %v838 = vperm.slane %v396, %v800
    %v843 = vperm.slane %v441, %v800
    %v844 = vperm.slane %v446, %v800
    %v849 = vperm.slane %v491, %v800
    %v850 = vperm.slane %v496, %v800
    %v855 = vperm.slane %v541, %v800
    %v856 = vperm.slane %v546, %v800
    %v861 = vperm.slane %v591, %v800
    %v862 = vperm.slane %v596, %v800
    %v867 = vperm.slane %v641, %v800
    %v868 = vperm.slane %v646, %v800
    %v873 = vperm.slane %v691, %v800
    %v874 = vperm.slane %v696, %v800
    %v879 = vperm.slane %v741, %v800
    %v880 = vperm.slane %v746, %v800
    %v885 = vperm.slane %v791, %v800
    %v886 = vperm.slane %v796, %v800
    %v889 = vsel %vm76, %v801, %v807
    %v890 = vsel %vm76, %v802, %v808
    %vm891 = vcmask 1041408
    %v892 = vsel %vm891, %v889, %v813
    %v893 = vsel %vm891, %v890, %v814
    %vm894 = vcmask 1042432
    %v895 = vsel %vm894, %v892, %v819
    %v896 = vsel %vm894, %v893, %v820
    %v897 = vsel %vm58, %v895, %v825
    %v898 = vsel %vm58, %v896, %v826
    %vm899 = vcmask 1044480
    %v900 = vsel %vm899, %v897, %v831
    %v901 = vsel %vm899, %v898, %v832
    %vm902 = vcmask 1045504
    %v903 = vsel %vm902, %v900, %v837
    %v904 = vsel %vm902, %v901, %v838
    %vm905 = vcmask 1046528
    %v906 = vsel %vm905, %v903, %v843
    %v907 = vsel %vm905, %v904, %v844
    %v908 = vsel %vm76, %v849, %v855
    %v909 = vsel %vm76, %v850, %v856
    %v910 = vsel %vm891, %v908, %v861
    %v911 = vsel %vm891, %v909, %v862
    %v912 = vsel %vm894, %v910, %v867
    %v913 = vsel %vm894, %v911, %v868
    %v914 = vsel %vm58, %v912, %v873
    %v915 = vsel %vm58, %v913, %v874
    %v916 = vsel %vm899, %v914, %v879
    %v917 = vsel %vm899, %v915, %v880
    %v918 = vsel %vm902, %v916, %v885
    %v919 = vsel %vm902, %v917, %v886
    %vm920 = vcmask 31744
    %921 = vst.msk [vmem:[%s2] sm:$0xff] %vm920, %v906
    %vm922 = vcmask 30720
    %923 = vst.msk [vmem:[%s2 + $0x8] sm:$0x7f] %vm922, %v918
    %924 = vst.msk [vmem:[%s2 + $0x10] sm:$0xff] %vm920, %v907
    %925 = vst.msk [vmem:[%s2 + $0x18] sm:$0x7f] %vm922, %v919
    // Predicated region
    $region18: #{tpu_custom_call.1} parent=1 // pred_check
      _
    $region19: #{tpu_custom_call.1} parent=1 // pred_check_branch
      %927 = sbr.rel (0) target = $region21
    $region20: #{tpu_custom_call.1} parent=1 // pred_region
      _
    $region21: #{tpu_custom_call.1} parent=1 // pred_fallthru
      _
    // Predicated region
    $region22: #{tpu_custom_call.1} parent=1 // pred_check
      _
    $region23: #{tpu_custom_call.1} parent=1 // pred_check_branch
      %929 = sbr.rel (0) target = $region25
    $region24: #{tpu_custom_call.1} parent=1 // pred_region
      _
    $region25: #{tpu_custom_call.1} parent=1 // pred_fallthru
      _
    %930 = vsyncpa [#allocation3], 1
    %931 = vsyncpa [#allocation5], 1

</llo_original>
